<compile_context>
chip_gen: v7x
topology: tpu7x:2x2x1
jax: 0.10.0
libtpu: 0.0.40
codegen_flags: <defaults>
</compile_context>

<pallas_src>
import jax
import jax.numpy as jnp
from jax.experimental import pallas as pl
from jax.experimental.pallas import tpu as pltpu


def _attention_kernel(x_ref, w_ref, o_ref):
    # x_ref: (TB, S, H) input block, resident in VMEM
    # w_ref: (3, H, H)  pre-transposed [Wq.T, Wk.T, Wv.T]
    # o_ref: (TB, H)
    TB, S, H = x_ref.shape

    # Projections: three (TB*S, H) @ (H, H) MXU matmuls.  Lane-aligned weight
    # tiles (no 0/32/64-lane slicing of a fused (H,3H) result).
    x2 = x_ref[...].reshape(TB * S, H)
    q = jnp.dot(x2, w_ref[0], preferred_element_type=jnp.float32).reshape(TB, S, H)
    k = jnp.dot(x2, w_ref[1], preferred_element_type=jnp.float32).reshape(TB, S, H)
    v = jnp.dot(x2, w_ref[2], preferred_element_type=jnp.float32).reshape(TB, S, H)

    # Transposed logits: alpha_t[b, k, q] = Q[b, q] . K[b, k]  (contract last
    # dims, no explicit transpose).  Keeping the key axis on sublanes makes the
    # post-softmax query-mean come out directly as (TB, S, 1) -- no relayout
    # before the broadcast against V.
    alpha_t = jnp.einsum("bkd,bqd->bkq", k, q,
                         preferred_element_type=jnp.float32)       # (TB, Sk, Sq)

    # Softmax over the key axis (axis=1), f32 throughout.
    m = jnp.max(alpha_t, axis=1, keepdims=True)
    e = jnp.exp(alpha_t - m)
    p_t = e / jnp.sum(e, axis=1, keepdims=True)                    # (TB, Sk, Sq)

    # mean_q(p @ V) == (mean_q p) @ V.  Final contraction on the VPU
    # (broadcast-multiply + sublane reduce) instead of an M=1 MXU matvec.
    p_mean = jnp.mean(p_t, axis=2, keepdims=True)                  # (TB, Sk, 1)
    out = jnp.sum(p_mean * v, axis=1)                              # (TB, H)
    o_ref[...] = out.astype(o_ref.dtype)


def init_attention_weights(wq, wk, wv):
    """Fuse + pre-transpose the projection weights ONCE (layer init).

    nn.Linear stores W as (out, in) and computes y = x @ W.T, so stack the
    transposes into a single (3, H, H) array."""
    return jnp.stack([wq.T, wk.T, wv.T], axis=0)


def attention_layer(inputs, wqkv_t, *, block_b=128):
    """inputs: (B, S, H) f32; wqkv_t: (3, H, H) from init_attention_weights.
    Returns (B, H) f32 = mean over seq of softmax(Q K^T) V."""
    B, S, H = inputs.shape

    if B % block_b == 0 and B >= 2 * block_b:
        # Large-batch path: grid over B so Mosaic can shard the parallel axis
        # across both TensorCores on v7x (no-op on v5e/v6e).  Blocks here are
        # tiny (<< the scoped-VMEM default on any generation); re-budget block_b
        # against v7x's 64 MiB physical VMEM before scaling it up.
        # TODO(synk): H=32 keeps the output store lane-masked; a lane-dense
        # packing would require changing the module's output layout.
        return pl.pallas_call(
            _attention_kernel,
            out_shape=jax.ShapeDtypeStruct((B, H), jnp.float32),
            grid_spec=pltpu.PrefetchScalarGridSpec(
                num_scalar_prefetch=0,
                grid=(B // block_b,),
                in_specs=[
                    pl.BlockSpec((block_b, S, H), lambda i: (i, 0, 0)),
                    pl.BlockSpec((3, H, H), lambda i: (0, 0, 0)),
                ],
                out_specs=pl.BlockSpec((block_b, H), lambda i: (i, 0)),
            ),
            compiler_params=pltpu.CompilerParams(
                dimension_semantics=("parallel",)),
        )(inputs, wqkv_t)

    # Small-batch path: single step, whole problem resident in VMEM (avoids
    # the ~0.35 us/step grid-pipeline overhead, which dominates at this size).
    return pl.pallas_call(
        _attention_kernel,
        out_shape=jax.ShapeDtypeStruct((B, H), jnp.float32),
    )(inputs, wqkv_t)


# Jit the whole forward: removes per-call Python/XLA dispatch overhead, which
# rivals the kernel's total data movement at these sizes.
attention_forward = jax.jit(attention_layer, static_argnames=("block_b",))


def attention_layer_ref(inputs, wq, wk, wv):
    """Pure-JAX reference matching the PyTorch module."""
    q = jnp.einsum("bsh,oh->bso", inputs, wq)
    k = jnp.einsum("bsh,oh->bso", inputs, wk)
    v = jnp.einsum("bsh,oh->bso", inputs, wv)
    alpha = jax.nn.softmax(jnp.einsum("bqh,bkh->bqk", q, k), axis=2)
    out = jnp.einsum("bqk,bkh->bqh", alpha, v)
    return jnp.mean(out, axis=-2)


if __name__ == "__main__":
    S, H = 8, 32  # sequence length, hidden_dim

    key = jax.random.PRNGKey(0)
    k_x, k_q, k_k, k_v, k_xg = jax.random.split(key, 5)

    # Deterministic init matching nn.Linear(H, H, bias=False) weight shape.
    bound = 1.0 / (H ** 0.5)
    wq = jax.random.uniform(k_q, (H, H), jnp.float32, -bound, bound)
    wk = jax.random.uniform(k_k, (H, H), jnp.float32, -bound, bound)
    wv = jax.random.uniform(k_v, (H, H), jnp.float32, -bound, bound)

    # Weight prep hoisted out of the per-call path (done once at "init").
    wqkv_t = init_attention_weights(wq, wk, wv)

    # --- Small-shape path (module's toy config, single-step kernel) ---------
    B = 2
    x = jax.random.normal(k_x, (B, S, H), dtype=jnp.float32)
    out = jax.block_until_ready(attention_forward(x, wqkv_t))
    ref = attention_layer_ref(x, wq, wk, wv)
    assert out.shape == (B, H), out.shape
    assert jnp.allclose(out, ref, atol=1e-5, rtol=1e-5), \
        float(jnp.max(jnp.abs(out - ref)))

    # --- Large-batch path (exercises the gridded / dual-TC code path) -------
    Bg = 256
    xg = jax.random.normal(k_xg, (Bg, S, H), dtype=jnp.float32)
    outg = jax.block_until_ready(attention_forward(xg, wqkv_t))
    refg = attention_layer_ref(xg, wq, wk, wv)
    assert outg.shape == (Bg, H), outg.shape
    assert jnp.allclose(outg, refg, atol=1e-4, rtol=1e-4), \
        float(jnp.max(jnp.abs(outg - refg)))

    print("KERNEL_OK")
</pallas_src>

<mosaic_0001>
module attributes {stable_mosaic.version = 11 : i64} {
  func.func @_attention_kernel(%arg0: memref<2x8x32xf32, #tpu.memory_space<vmem>>, %arg1: memref<3x32x32xf32, #tpu.memory_space<vmem>>, %arg2: memref<2x32xf32, #tpu.memory_space<vmem>>) attributes {dimension_semantics = [], scalar_prefetch = 0 : i64, scratch_operands = 0 : i64, tpu.core_type = #tpu.core_type<tc>} {
    %c0 = arith.constant 0 : index
    %c0_0 = arith.constant 0 : index
    %c0_1 = arith.constant 0 : index
    %0 = vector.load %arg0[%c0, %c0_0, %c0_1] : memref<2x8x32xf32, #tpu.memory_space<vmem>>, vector<2x8x32xf32>
    %1 = vector.shape_cast %0 : vector<2x8x32xf32> to vector<16x32xf32>
    %c0_2 = arith.constant 0 : index
    %c0_3 = arith.constant 0 : index
    %c0_4 = arith.constant 0 : index
    %2 = vector.load %arg1[%c0_2, %c0_3, %c0_4] : memref<3x32x32xf32, #tpu.memory_space<vmem>>, vector<1x32x32xf32>
    %3 = vector.shape_cast %2 : vector<1x32x32xf32> to vector<32x32xf32>
    %cst = arith.constant dense<0.000000e+00> : vector<16x32xf32>
    %4 = tpu.matmul %1, %3, %cst {dimension_numbers = #tpu.dot_dimension_numbers<[1], [0], [0], [1], [0, 0, 1, 1], [], []>} : vector<16x32xf32>, vector<32x32xf32>, vector<16x32xf32> -> vector<16x32xf32>
    %5 = vector.shape_cast %4 : vector<16x32xf32> to vector<2x8x32xf32>
    %c1 = arith.constant 1 : index
    %c0_5 = arith.constant 0 : index
    %c0_6 = arith.constant 0 : index
    %6 = vector.load %arg1[%c1, %c0_5, %c0_6] : memref<3x32x32xf32, #tpu.memory_space<vmem>>, vector<1x32x32xf32>
    %7 = vector.shape_cast %6 : vector<1x32x32xf32> to vector<32x32xf32>
    %cst_7 = arith.constant dense<0.000000e+00> : vector<16x32xf32>
    %8 = tpu.matmul %1, %7, %cst_7 {dimension_numbers = #tpu.dot_dimension_numbers<[1], [0], [0], [1], [0, 0, 1, 1], [], []>} : vector<16x32xf32>, vector<32x32xf32>, vector<16x32xf32> -> vector<16x32xf32>
    %9 = vector.shape_cast %8 : vector<16x32xf32> to vector<2x8x32xf32>
    %c2 = arith.constant 2 : index
    %c0_8 = arith.constant 0 : index
    %c0_9 = arith.constant 0 : index
    %10 = vector.load %arg1[%c2, %c0_8, %c0_9] : memref<3x32x32xf32, #tpu.memory_space<vmem>>, vector<1x32x32xf32>
    %11 = vector.shape_cast %10 : vector<1x32x32xf32> to vector<32x32xf32>
    %cst_10 = arith.constant dense<0.000000e+00> : vector<16x32xf32>
    %12 = tpu.matmul %1, %11, %cst_10 {dimension_numbers = #tpu.dot_dimension_numbers<[1], [0], [0], [1], [0, 0, 1, 1], [], []>} : vector<16x32xf32>, vector<32x32xf32>, vector<16x32xf32> -> vector<16x32xf32>
    %13 = vector.shape_cast %12 : vector<16x32xf32> to vector<2x8x32xf32>
    "tpu.trace_start"() <{level = 10 : i32, message = "bkd,bqd->bkq"}> : () -> ()
    %cst_11 = arith.constant dense<0.000000e+00> : vector<2x8x8xf32>
    %14 = tpu.matmul %9, %5, %cst_11 {dimension_numbers = #tpu.dot_dimension_numbers<[2], [2], [1], [1], [0, 0, 0, 1, 1, 1], [0], [0]>} : vector<2x8x32xf32>, vector<2x8x32xf32>, vector<2x8x8xf32> -> vector<2x8x8xf32>
    "tpu.trace_stop"() : () -> ()
    %cst_12 = arith.constant dense<0xFF800000> : vector<2x8xf32>
    %15 = vector.multi_reduction <maximumf>, %14, %cst_12 [1] : vector<2x8x8xf32> to vector<2x8xf32>
    %16 = vector.shape_cast %15 : vector<2x8xf32> to vector<2x1x8xf32>
    %17 = vector.broadcast %16 : vector<2x1x8xf32> to vector<2x8x8xf32>
    %18 = arith.subf %14, %17 : vector<2x8x8xf32>
    %19 = math.exp %18 : vector<2x8x8xf32>
    %cst_13 = arith.constant dense<0.000000e+00> : vector<2x8xf32>
    %20 = vector.multi_reduction <add>, %19, %cst_13 [1] : vector<2x8x8xf32> to vector<2x8xf32>
    %21 = vector.shape_cast %20 : vector<2x8xf32> to vector<2x1x8xf32>
    %22 = vector.broadcast %21 : vector<2x1x8xf32> to vector<2x8x8xf32>
    %23 = arith.divf %19, %22 : vector<2x8x8xf32>
    %cst_14 = arith.constant dense<0.000000e+00> : vector<2x8xf32>
    %24 = vector.multi_reduction <add>, %23, %cst_14 [2] : vector<2x8x8xf32> to vector<2x8xf32>
    %25 = vector.shape_cast %24 : vector<2x8xf32> to vector<2x8x1xf32>
    %cst_15 = arith.constant 8.000000e+00 : f32
    %26 = vector.broadcast %cst_15 : f32 to vector<2x8x1xf32>
    %27 = arith.divf %25, %26 : vector<2x8x1xf32>
    %28 = vector.broadcast %27 : vector<2x8x1xf32> to vector<2x8x32xf32>
    %29 = arith.mulf %28, %13 : vector<2x8x32xf32>
    %cst_16 = arith.constant dense<0.000000e+00> : vector<2x32xf32>
    %30 = vector.multi_reduction <add>, %29, %cst_16 [1] : vector<2x8x32xf32> to vector<2x32xf32>
    %c0_17 = arith.constant 0 : index
    %c0_18 = arith.constant 0 : index
    %31 = vector.load %arg2[%c0_17, %c0_18] : memref<2x32xf32, #tpu.memory_space<vmem>>, vector<2x32xf32>
    tpu.vector_store %arg2[%c0_17, %c0_18], %30 {strides = array<i32>} : memref<2x32xf32, #tpu.memory_space<vmem>>, vector<2x32xf32>,
    return
  }
}

</mosaic_0001>

<llo_original>
// kernel: attention_layer.1
$region0: #{attention_layer.1}
  #allocation0 [shape = 'u32[]', space=smem, size = 0x4, offset = 0x4, fixed_abs, tag = 'smem constant byte address 0x4 - core index']
  #allocation1 [shape = 'u32[144,128]{1,0:T(1,128)}', space=vmem, size = 0x12000, scoped, tag = 'internal scratch']
  %s0 = inlined_call_operand.hbm [shape: f32[2,8,32], index: 0, kind: input, shape index: {}]
  %s1 = inlined_call_operand.hbm [shape: f32[3,32,32], index: 1, kind: input, shape index: {}]
  %s2 = inlined_call_operand.hbm [shape: f32[2,32], index: 2, kind: output, shape index: {}]
  %s3 = sld [smem:[#allocation0]]
  $region26: #{attention_layer.1} parent=0
    _
  %s5 = ssub.s32 1, %s3
  %s6 = scalar_select 0, %s5, %s3
  $region1: #{attention_layer.1} parent=0
    #allocation2 [shape = 'u8[8192]{0}', space=vmem, size = 0x2000, scoped, tag = 'input window, operand 0, single buffered']
    #allocation3 [shape = 's32[1]{0}', space=sflag, size = 0x4, scoped, tag = 'scoped memory for attention_layer.1']
    #allocation4 [shape = 's32[1]{0}', space=sflag, size = 0x4, scoped, tag = 'scoped memory for attention_layer.1']
    #allocation5 [shape = 'u8[49152]{0}', space=vmem, size = 0xc000, scoped, tag = 'input window, operand 1, single buffered']
    #allocation6 [shape = 's32[1]{0}', space=sflag, size = 0x4, scoped, tag = 'scoped memory for attention_layer.1']
    #allocation7 [shape = 'u8[1024]{0}', space=vmem, size = 0x400, scoped, tag = 'output window, operand 0, single buffered']
    %7 = vsyncpa [#allocation3], 0
    %8 = vsyncpa [#allocation6], 0
    %9 = vsyncpa [#allocation4], 0
    // Predicated region
    $region2: #{attention_layer.1} parent=1 // pred_check
      _
    $region3: #{attention_layer.1} parent=1 // pred_check_branch
      %11 = sbr.rel (0) target = $region5
    $region4: #{attention_layer.1} parent=1 // pred_region
      %s13 = ssub.s32 256, 256
      %14 = vsyncadd [#allocation3], %s13
      %s15 = sshll.u32 [#allocation2], 4
      %s16 = int_to_ptr.vmem [resolvable:$true] %s15
      %21 = dma.hbm_to_vmem [thread:$0]  %s0, 256, %s16, [#allocation3], 128, 128, 8
    $region5: #{attention_layer.1} parent=1 // pred_fallthru
      _
    // Predicated region
    $region6: #{attention_layer.1} parent=1 // pred_check
      _
    $region7: #{attention_layer.1} parent=1 // pred_check_branch
      %23 = sbr.rel (0) target = $region9
    $region8: #{attention_layer.1} parent=1 // pred_region
      %s25 = ssub.s32 1536, 1536
      %26 = vsyncadd [#allocation6], %s25
      %s27 = sshll.u32 [#allocation5], 4
      %s28 = int_to_ptr.vmem [resolvable:$true] %s27
      %33 = dma.hbm_to_vmem [thread:$0]  %s1, 1536, %s28, [#allocation6], 128, 128, 8
    $region9: #{attention_layer.1} parent=1 // pred_fallthru
      _
    // Predicated region
    $region10: #{attention_layer.1} parent=1 // pred_check
      _
    $region11: #{attention_layer.1} parent=1 // pred_check_branch
      %35 = sbr.rel (0) target = $region13
    $region12: #{attention_layer.1} parent=1 // pred_region
      %36 = dma.done [#allocation3], 256
    $region13: #{attention_layer.1} parent=1 // pred_fallthru
      _
    // Predicated region
    $region14: #{attention_layer.1} parent=1 // pred_check
      _
    $region15: #{attention_layer.1} parent=1 // pred_check_branch
      %38 = sbr.rel (0) target = $region17
    $region16: #{attention_layer.1} parent=1 // pred_region
      %39 = dma.done [#allocation6], 1536
    $region17: #{attention_layer.1} parent=1 // pred_fallthru
      _
    %v40 = vld [vmem:[#allocation2] sm:$0xff]
    %v41 = vld [vmem:[#allocation2 + $0x8] sm:$0xff]
    %v42 = vld [vmem:[#allocation5] sm:$0xff]
    %v43 = vld [vmem:[#allocation5 + $0x8] sm:$0xff]
    %v44 = vld [vmem:[#allocation5 + $0x10] sm:$0xff]
    %v45 = vld [vmem:[#allocation5 + $0x18] sm:$0xff]
    %vm46 = vcmask 261120
    %v48 = vsel %vm46, %v40, 0
    %v51 = vsel %vm46, %v41, 0
    %53 = vmatprep.subr.mxu0 0.0
    %54 = vmatpush1.msra.mxu0 %v42
    %55 = vmatprep.subr.mxu0 0.0
    %56 = vmatpush1.msra.mxu0 %v43
    %57 = vmatprep.subr.mxu0 0.0
    %58 = vmatpush1.msra.mxu0 %v44
    %59 = vmatprep.subr.mxu0 0.0
    %60 = vmatpush1.msra.mxu0 %v45
    %61 = vmatprep.subr.mxu0 0.0
    %62 = vmatpush1.msra.mxu0 0.0
    %63 = vmatprep.subr.mxu0 0.0
    %64 = vmatpush1.msra.mxu0 0.0
    %65 = vmatprep.subr.mxu0 0.0
    %66 = vmatpush1.msra.mxu0 0.0
    %67 = vmatprep.subr.mxu0 0.0
    %68 = vmatpush1.msra.mxu0 0.0
    %69 = vmatprep.subr.mxu0 0.0
    %70 = vmatpush1.msra.mxu0 0.0
    %71 = vmatprep.subr.mxu0 0.0
    %72 = vmatpush1.msra.mxu0 0.0
    %73 = vmatprep.subr.mxu0 0.0
    %74 = vmatpush1.msra.mxu0 0.0
    %75 = vmatprep.subr.mxu0 0.0
    %76 = vmatpush1.msra.mxu0 0.0
    %77 = vmatprep.subr.mxu0 0.0
    %78 = vmatpush1.msra.mxu0 0.0
    %79 = vmatprep.subr.mxu0 0.0
    %80 = vmatpush1.msra.mxu0 0.0
    %81 = vmatprep.subr.mxu0 0.0
    %82 = vmatpush1.msra.mxu0 0.0
    %83 = vmatprep.subr.mxu0 0.0
    %84 = vmatpush1.msra.mxu0 0.0
    %85 = vmatprep.subr.mxu0 0.0
    %86 = vmatpush1.msra.mxu0 0.0
    %87 = vmatprep.subr.mxu0 0.0
    %88 = vmatpush1.msra.mxu0 0.0
    %89 = vmatprep.subr.mxu0 0.0
    %90 = vmatpush1.msra.mxu0 0.0
    %91 = vmatprep.subr.mxu0 0.0
    %92 = vmatpush1.msra.mxu0 0.0
    %93 = vmatprep.subr.mxu0 0.0
    %94 = vmatpush1.msra.mxu0 0.0
    %95 = vmatprep.subr.mxu0 0.0
    %96 = vmatpush1.msra.mxu0 0.0
    %97 = vmatprep.subr.mxu0 0.0
    %98 = vmatpush1.msra.mxu0 0.0
    %99 = vmatprep.subr.mxu0 0.0
    %100 = vmatpush1.msra.mxu0 0.0
    %101 = vmatprep.subr.mxu0 0.0
    %102 = vmatpush1.msra.mxu0 0.0
    %103 = vmatprep.subr.mxu0 0.0
    %104 = vmatpush1.msra.mxu0 0.0
    %105 = vmatprep.subr.mxu0 0.0
    %106 = vmatpush1.msra.mxu0 0.0
    %107 = vmatprep.subr.mxu0 0.0
    %108 = vmatpush1.msra.mxu0 0.0
    %109 = vmatprep.subr.mxu0 0.0
    %110 = vmatpush1.msra.mxu0 0.0
    %111 = vmatprep.subr.mxu0 0.0
    %112 = vmatpush1.msra.mxu0 0.0
    %113 = vmatprep.subr.mxu0 0.0
    %114 = vmatpush1.msra.mxu0 0.0
    %115 = vmatprep.subr.mxu0 0.0
    %116 = vmatpush1.msra.mxu0 0.0
    %117 = vmatprep.mubr.f32.mxu0 0.0
    %118 = vmatmul.mubr.f32.gmra.mrb[0].mxu0 %v48
    %v119 = vpop.f32.mrb[0].mxu0
    %v120 = vadd.f32 0.0, %v119
    %v121 = vpop.f32.mrb[0].mxu0
    %122 = vmatprep.mubr.f32.mxu0 0.0
    %123 = vmatmul.mubr.f32.gmra.mrb[0].mxu0 %v51
    %v124 = vpop.f32.mrb[0].mxu0
    %v125 = vadd.f32 0.0, %v124
    %v126 = vpop.f32.mrb[0].mxu0
    %127 = vdwg.mxu0
    %s128 = scalar_lea.vmem [#allocation5], 32
    %v129 = vld [vmem:[%s128] sm:$0xff]
    %v130 = vld [vmem:[%s128 + $0x8] sm:$0xff]
    %v131 = vld [vmem:[%s128 + $0x10] sm:$0xff]
    %v132 = vld [vmem:[%s128 + $0x18] sm:$0xff]
    %133 = vmatprep.subr.mxu0 0.0
    %134 = vmatpush1.msra.mxu0 %v129
    %135 = vmatprep.subr.mxu0 0.0
    %136 = vmatpush1.msra.mxu0 %v130
    %137 = vmatprep.subr.mxu0 0.0
    %138 = vmatpush1.msra.mxu0 %v131
    %139 = vmatprep.subr.mxu0 0.0
    %140 = vmatpush1.msra.mxu0 %v132
    %141 = vmatprep.subr.mxu0 0.0
    %142 = vmatpush1.msra.mxu0 0.0
    %143 = vmatprep.subr.mxu0 0.0
    %144 = vmatpush1.msra.mxu0 0.0
    %145 = vmatprep.subr.mxu0 0.0
    %146 = vmatpush1.msra.mxu0 0.0
    %147 = vmatprep.subr.mxu0 0.0
    %148 = vmatpush1.msra.mxu0 0.0
    %149 = vmatprep.subr.mxu0 0.0
    %150 = vmatpush1.msra.mxu0 0.0
    %151 = vmatprep.subr.mxu0 0.0
    %152 = vmatpush1.msra.mxu0 0.0
    %153 = vmatprep.subr.mxu0 0.0
    %154 = vmatpush1.msra.mxu0 0.0
    %155 = vmatprep.subr.mxu0 0.0
    %156 = vmatpush1.msra.mxu0 0.0
    %157 = vmatprep.subr.mxu0 0.0
    %158 = vmatpush1.msra.mxu0 0.0
    %159 = vmatprep.subr.mxu0 0.0
    %160 = vmatpush1.msra.mxu0 0.0
    %161 = vmatprep.subr.mxu0 0.0
    %162 = vmatpush1.msra.mxu0 0.0
    %163 = vmatprep.subr.mxu0 0.0
    %164 = vmatpush1.msra.mxu0 0.0
    %165 = vmatprep.subr.mxu0 0.0
    %166 = vmatpush1.msra.mxu0 0.0
    %167 = vmatprep.subr.mxu0 0.0
    %168 = vmatpush1.msra.mxu0 0.0
    %169 = vmatprep.subr.mxu0 0.0
    %170 = vmatpush1.msra.mxu0 0.0
    %171 = vmatprep.subr.mxu0 0.0
    %172 = vmatpush1.msra.mxu0 0.0
    %173 = vmatprep.subr.mxu0 0.0
    %174 = vmatpush1.msra.mxu0 0.0
    %175 = vmatprep.subr.mxu0 0.0
    %176 = vmatpush1.msra.mxu0 0.0
    %177 = vmatprep.subr.mxu0 0.0
    %178 = vmatpush1.msra.mxu0 0.0
    %179 = vmatprep.subr.mxu0 0.0
    %180 = vmatpush1.msra.mxu0 0.0
    %181 = vmatprep.subr.mxu0 0.0
    %182 = vmatpush1.msra.mxu0 0.0
    %183 = vmatprep.subr.mxu0 0.0
    %184 = vmatpush1.msra.mxu0 0.0
    %185 = vmatprep.subr.mxu0 0.0
    %186 = vmatpush1.msra.mxu0 0.0
    %187 = vmatprep.subr.mxu0 0.0
    %188 = vmatpush1.msra.mxu0 0.0
    %189 = vmatprep.subr.mxu0 0.0
    %190 = vmatpush1.msra.mxu0 0.0
    %191 = vmatprep.subr.mxu0 0.0
    %192 = vmatpush1.msra.mxu0 0.0
    %193 = vmatprep.subr.mxu0 0.0
    %194 = vmatpush1.msra.mxu0 0.0
    %195 = vmatprep.subr.mxu0 0.0
    %196 = vmatpush1.msra.mxu0 0.0
    %197 = vmatprep.mubr.f32.mxu0 0.0
    %198 = vmatmul.mubr.f32.gmra.mrb[0].mxu0 %v48
    %v199 = vpop.f32.mrb[0].mxu0
    %v200 = vadd.f32 0.0, %v199
    %v201 = vpop.f32.mrb[0].mxu0
    %202 = vmatprep.mubr.f32.mxu0 0.0
    %203 = vmatmul.mubr.f32.gmra.mrb[0].mxu0 %v51
    %v204 = vpop.f32.mrb[0].mxu0
    %v205 = vadd.f32 0.0, %v204
    %v206 = vpop.f32.mrb[0].mxu0
    %207 = vdwg.mxu0
    %s208 = scalar_lea.vmem [#allocation5], 64
    %v209 = vld [vmem:[%s208] sm:$0xff]
    %v210 = vld [vmem:[%s208 + $0x8] sm:$0xff]
    %v211 = vld [vmem:[%s208 + $0x10] sm:$0xff]
    %v212 = vld [vmem:[%s208 + $0x18] sm:$0xff]
    %213 = vmatprep.subr.mxu0 0.0
    %214 = vmatpush1.msra.mxu0 %v209
    %215 = vmatprep.subr.mxu0 0.0
    %216 = vmatpush1.msra.mxu0 %v210
    %217 = vmatprep.subr.mxu0 0.0
    %218 = vmatpush1.msra.mxu0 %v211
    %219 = vmatprep.subr.mxu0 0.0
    %220 = vmatpush1.msra.mxu0 %v212
    %221 = vmatprep.subr.mxu0 0.0
    %222 = vmatpush1.msra.mxu0 0.0
    %223 = vmatprep.subr.mxu0 0.0
    %224 = vmatpush1.msra.mxu0 0.0
    %225 = vmatprep.subr.mxu0 0.0
    %226 = vmatpush1.msra.mxu0 0.0
    %227 = vmatprep.subr.mxu0 0.0
    %228 = vmatpush1.msra.mxu0 0.0
    %229 = vmatprep.subr.mxu0 0.0
    %230 = vmatpush1.msra.mxu0 0.0
    %231 = vmatprep.subr.mxu0 0.0
    %232 = vmatpush1.msra.mxu0 0.0
    %233 = vmatprep.subr.mxu0 0.0
    %234 = vmatpush1.msra.mxu0 0.0
    %235 = vmatprep.subr.mxu0 0.0
    %236 = vmatpush1.msra.mxu0 0.0
    %237 = vmatprep.subr.mxu0 0.0
    %238 = vmatpush1.msra.mxu0 0.0
    %239 = vmatprep.subr.mxu0 0.0
    %240 = vmatpush1.msra.mxu0 0.0
    %241 = vmatprep.subr.mxu0 0.0
    %242 = vmatpush1.msra.mxu0 0.0
    %243 = vmatprep.subr.mxu0 0.0
    %244 = vmatpush1.msra.mxu0 0.0
    %245 = vmatprep.subr.mxu0 0.0
    %246 = vmatpush1.msra.mxu0 0.0
    %247 = vmatprep.subr.mxu0 0.0
    %248 = vmatpush1.msra.mxu0 0.0
    %249 = vmatprep.subr.mxu0 0.0
    %250 = vmatpush1.msra.mxu0 0.0
    %251 = vmatprep.subr.mxu0 0.0
    %252 = vmatpush1.msra.mxu0 0.0
    %253 = vmatprep.subr.mxu0 0.0
    %254 = vmatpush1.msra.mxu0 0.0
    %255 = vmatprep.subr.mxu0 0.0
    %256 = vmatpush1.msra.mxu0 0.0
    %257 = vmatprep.subr.mxu0 0.0
    %258 = vmatpush1.msra.mxu0 0.0
    %259 = vmatprep.subr.mxu0 0.0
    %260 = vmatpush1.msra.mxu0 0.0
    %261 = vmatprep.subr.mxu0 0.0
    %262 = vmatpush1.msra.mxu0 0.0
    %263 = vmatprep.subr.mxu0 0.0
    %264 = vmatpush1.msra.mxu0 0.0
    %265 = vmatprep.subr.mxu0 0.0
    %266 = vmatpush1.msra.mxu0 0.0
    %267 = vmatprep.subr.mxu0 0.0
    %268 = vmatpush1.msra.mxu0 0.0
    %269 = vmatprep.subr.mxu0 0.0
    %270 = vmatpush1.msra.mxu0 0.0
    %271 = vmatprep.subr.mxu0 0.0
    %272 = vmatpush1.msra.mxu0 0.0
    %273 = vmatprep.subr.mxu0 0.0
    %274 = vmatpush1.msra.mxu0 0.0
    %275 = vmatprep.subr.mxu0 0.0
    %276 = vmatpush1.msra.mxu0 0.0
    %277 = vmatprep.mubr.f32.mxu0 0.0
    %278 = vmatmul.mubr.f32.gmra.mrb[0].mxu0 %v48
    %v279 = vpop.f32.mrb[0].mxu0
    %v280 = vadd.f32 0.0, %v279
    %v281 = vpop.f32.mrb[0].mxu0
    %282 = vmatprep.mubr.f32.mxu0 0.0
    %283 = vmatmul.mubr.f32.gmra.mrb[0].mxu0 %v51
    %v284 = vpop.f32.mrb[0].mxu0
    %v285 = vadd.f32 0.0, %v284
    %v286 = vpop.f32.mrb[0].mxu0
    %287 = vdwg.mxu0
    %v289 = vsel %vm46, %v200, 0
    %v292 = vsel %vm46, %v120, 0
    %294 = vmatprep.subr.mxu0 0.0
    %295 = vmatpush1.xpose.msra.mxu0 %v292
    %296 = vmatprep.subr.mxu0 0.0
    %297 = vmatpush1.xpose.msra.mxu0 0.0
    %298 = vmatprep.subr.mxu0 0.0
    %299 = vmatpush1.xpose.msra.mxu0 0.0
    %300 = vmatprep.subr.mxu0 0.0
    %301 = vmatpush1.xpose.msra.mxu0 0.0
    %302 = vmatprep.subr.mxu0 0.0
    %303 = vmatpush1.xpose.msra.mxu0 0.0
    %304 = vmatprep.subr.mxu0 0.0
    %305 = vmatpush1.xpose.msra.mxu0 0.0
    %306 = vmatprep.subr.mxu0 0.0
    %307 = vmatpush1.xpose.msra.mxu0 0.0
    %308 = vmatprep.subr.mxu0 0.0
    %309 = vmatpush1.xpose.msra.mxu0 0.0
    %310 = vmatprep.subr.mxu0 0.0
    %311 = vmatpush1.xpose.msra.mxu0 0.0
    %312 = vmatprep.subr.mxu0 0.0
    %313 = vmatpush1.xpose.msra.mxu0 0.0
    %314 = vmatprep.subr.mxu0 0.0
    %315 = vmatpush1.xpose.msra.mxu0 0.0
    %316 = vmatprep.subr.mxu0 0.0
    %317 = vmatpush1.xpose.msra.mxu0 0.0
    %318 = vmatprep.subr.mxu0 0.0
    %319 = vmatpush1.xpose.msra.mxu0 0.0
    %320 = vmatprep.subr.mxu0 0.0
    %321 = vmatpush1.xpose.msra.mxu0 0.0
    %322 = vmatprep.subr.mxu0 0.0
    %323 = vmatpush1.xpose.msra.mxu0 0.0
    %324 = vmatprep.subr.mxu0 0.0
    %325 = vmatpush1.xpose.msra.mxu0 0.0
    %326 = vmatprep.subr.mxu0 0.0
    %327 = vmatpush1.xpose.msra.mxu0 0.0
    %328 = vmatprep.subr.mxu0 0.0
    %329 = vmatpush1.xpose.msra.mxu0 0.0
    %330 = vmatprep.subr.mxu0 0.0
    %331 = vmatpush1.xpose.msra.mxu0 0.0
    %332 = vmatprep.subr.mxu0 0.0
    %333 = vmatpush1.xpose.msra.mxu0 0.0
    %334 = vmatprep.subr.mxu0 0.0
    %335 = vmatpush1.xpose.msra.mxu0 0.0
    %336 = vmatprep.subr.mxu0 0.0
    %337 = vmatpush1.xpose.msra.mxu0 0.0
    %338 = vmatprep.subr.mxu0 0.0
    %339 = vmatpush1.xpose.msra.mxu0 0.0
    %340 = vmatprep.subr.mxu0 0.0
    %341 = vmatpush1.xpose.msra.mxu0 0.0
    %342 = vmatprep.subr.mxu0 0.0
    %343 = vmatpush1.xpose.msra.mxu0 0.0
    %344 = vmatprep.subr.mxu0 0.0
    %345 = vmatpush1.xpose.msra.mxu0 0.0
    %346 = vmatprep.subr.mxu0 0.0
    %347 = vmatpush1.xpose.msra.mxu0 0.0
    %348 = vmatprep.subr.mxu0 0.0
    %349 = vmatpush1.xpose.msra.mxu0 0.0
    %350 = vmatprep.subr.mxu0 0.0
    %351 = vmatpush1.xpose.msra.mxu0 0.0
    %352 = vmatprep.subr.mxu0 0.0
    %353 = vmatpush1.xpose.msra.mxu0 0.0
    %354 = vmatprep.subr.mxu0 0.0
    %355 = vmatpush1.xpose.msra.mxu0 0.0
    %356 = vmatprep.subr.mxu0 0.0
    %357 = vmatpush1.xpose.msra.mxu0 0.0
    %358 = vmatprep.mubr.f32.mxu0 0.0
    %359 = vmatmul.mubr.f32.gmra.mrb[0].mxu0 %v289
    %v360 = vpop.f32.mrb[0].mxu0
    %v361 = vadd.f32 0.0, %v360
    %v362 = vpop.f32.mrb[0].mxu0
    %363 = vdwg.mxu0
    %v365 = vsel %vm46, %v205, 0
    %v368 = vsel %vm46, %v125, 0
    %370 = vmatprep.subr.mxu0 0.0
    %371 = vmatpush1.xpose.msra.mxu0 %v368
    %372 = vmatprep.subr.mxu0 0.0
    %373 = vmatpush1.xpose.msra.mxu0 0.0
    %374 = vmatprep.subr.mxu0 0.0
    %375 = vmatpush1.xpose.msra.mxu0 0.0
    %376 = vmatprep.subr.mxu0 0.0
    %377 = vmatpush1.xpose.msra.mxu0 0.0
    %378 = vmatprep.subr.mxu0 0.0
    %379 = vmatpush1.xpose.msra.mxu0 0.0
    %380 = vmatprep.subr.mxu0 0.0
    %381 = vmatpush1.xpose.msra.mxu0 0.0
    %382 = vmatprep.subr.mxu0 0.0
    %383 = vmatpush1.xpose.msra.mxu0 0.0
    %384 = vmatprep.subr.mxu0 0.0
    %385 = vmatpush1.xpose.msra.mxu0 0.0
    %386 = vmatprep.subr.mxu0 0.0
    %387 = vmatpush1.xpose.msra.mxu0 0.0
    %388 = vmatprep.subr.mxu0 0.0
    %389 = vmatpush1.xpose.msra.mxu0 0.0
    %390 = vmatprep.subr.mxu0 0.0
    %391 = vmatpush1.xpose.msra.mxu0 0.0
    %392 = vmatprep.subr.mxu0 0.0
    %393 = vmatpush1.xpose.msra.mxu0 0.0
    %394 = vmatprep.subr.mxu0 0.0
    %395 = vmatpush1.xpose.msra.mxu0 0.0
    %396 = vmatprep.subr.mxu0 0.0
    %397 = vmatpush1.xpose.msra.mxu0 0.0
    %398 = vmatprep.subr.mxu0 0.0
    %399 = vmatpush1.xpose.msra.mxu0 0.0
    %400 = vmatprep.subr.mxu0 0.0
    %401 = vmatpush1.xpose.msra.mxu0 0.0
    %402 = vmatprep.subr.mxu0 0.0
    %403 = vmatpush1.xpose.msra.mxu0 0.0
    %404 = vmatprep.subr.mxu0 0.0
    %405 = vmatpush1.xpose.msra.mxu0 0.0
    %406 = vmatprep.subr.mxu0 0.0
    %407 = vmatpush1.xpose.msra.mxu0 0.0
    %408 = vmatprep.subr.mxu0 0.0
    %409 = vmatpush1.xpose.msra.mxu0 0.0
    %410 = vmatprep.subr.mxu0 0.0
    %411 = vmatpush1.xpose.msra.mxu0 0.0
    %412 = vmatprep.subr.mxu0 0.0
    %413 = vmatpush1.xpose.msra.mxu0 0.0
    %414 = vmatprep.subr.mxu0 0.0
    %415 = vmatpush1.xpose.msra.mxu0 0.0
    %416 = vmatprep.subr.mxu0 0.0
    %417 = vmatpush1.xpose.msra.mxu0 0.0
    %418 = vmatprep.subr.mxu0 0.0
    %419 = vmatpush1.xpose.msra.mxu0 0.0
    %420 = vmatprep.subr.mxu0 0.0
    %421 = vmatpush1.xpose.msra.mxu0 0.0
    %422 = vmatprep.subr.mxu0 0.0
    %423 = vmatpush1.xpose.msra.mxu0 0.0
    %424 = vmatprep.subr.mxu0 0.0
    %425 = vmatpush1.xpose.msra.mxu0 0.0
    %426 = vmatprep.subr.mxu0 0.0
    %427 = vmatpush1.xpose.msra.mxu0 0.0
    %428 = vmatprep.subr.mxu0 0.0
    %429 = vmatpush1.xpose.msra.mxu0 0.0
    %430 = vmatprep.subr.mxu0 0.0
    %431 = vmatpush1.xpose.msra.mxu0 0.0
    %432 = vmatprep.subr.mxu0 0.0
    %433 = vmatpush1.xpose.msra.mxu0 0.0
    %434 = vmatprep.mubr.f32.mxu0 0.0
    %435 = vmatmul.mubr.f32.gmra.mrb[0].mxu0 %v365
    %v436 = vpop.f32.mrb[0].mxu0
    %v437 = vadd.f32 0.0, %v436
    %v438 = vpop.f32.mrb[0].mxu0
    %439 = vdwg.mxu0
    %vm440 = vcmask 64512
    %v441 = vsel %vm440, %v361, -inf
    %v442 = vrot.slane %v441, 4
    %v443 = vmax.f32 %v441, %v442
    %v444 = vrot.slane %v443, 2
    %v445 = vmax.f32 %v443, %v444
    %v446 = vrot.slane %v445, 1
    %v447 = vmax.f32 %v445, %v446
    %v448 = vsel %vm440, %v437, -inf
    %v449 = vrot.slane %v448, 4
    %v450 = vmax.f32 %v448, %v449
    %v451 = vrot.slane %v450, 2
    %v452 = vmax.f32 %v450, %v451
    %v453 = vrot.slane %v452, 1
    %v454 = vmax.f32 %v452, %v453
    %v455 = vsub.f32 %v361, %v447
    %v456 = vsub.f32 %v437, %v454
    %v457 = vmul.f32 %v455, 1.442695
    %v458 = vpow.pop %v457
    %v459 = vmul.f32 %v456, 1.442695
    %v460 = vpow.pop %v459
    %v461 = vsel %vm440, %v458, 0.0
    %v462 = vrot.slane %v461, 4
    %v463 = vadd.f32 %v461, %v462
    %v464 = vrot.slane %v463, 2
    %v465 = vadd.f32 %v463, %v464
    %v466 = vrot.slane %v465, 1
    %v467 = vadd.f32 %v465, %v466
    %v468 = vsel %vm440, %v460, 0.0
    %v469 = vrot.slane %v468, 4
    %v470 = vadd.f32 %v468, %v469
    %v471 = vrot.slane %v470, 2
    %v472 = vadd.f32 %v470, %v471
    %v473 = vrot.slane %v472, 1
    %v474 = vadd.f32 %v472, %v473
    %v475 = vrcp.pop %v467
    %v476 = vmul.f32 %v458, %v475
    %v477 = vrcp.pop %v474
    %v478 = vmul.f32 %v460, %v477
    %v479 = vsel %vm440, %v476, 0.0
    %480 = vadd.xlane.f32.xlu0 %v479
    %v481 = vpop.xlane.xlu0 %480
    %v482 = vsel %vm440, %v478, 0.0
    %483 = vadd.xlane.f32.xlu0 %v482
    %v484 = vpop.xlane.xlu0 %483
    %v485 = vrcp.pop 8.0
    %v486 = vmul.f32 %v481, %v485
    %v487 = vmul.f32 %v484, %v485
    %v488 = vmul.f32 %v486, %v280
    %v489 = vmul.f32 %v487, %v285
    %v490 = vsel %vm46, %v488, 0.0
    %v491 = vrot.slane %v490, 4
    %v492 = vadd.f32 %v490, %v491
    %v493 = vrot.slane %v492, 2
    %v494 = vadd.f32 %v492, %v493
    %v495 = vrot.slane %v494, 1
    %v496 = vadd.f32 %v494, %v495
    %v497 = vsel %vm46, %v489, 0.0
    %v498 = vrot.slane %v497, 4
    %v499 = vadd.f32 %v497, %v498
    %v500 = vrot.slane %v499, 2
    %v501 = vadd.f32 %v499, %v500
    %v502 = vrot.slane %v501, 1
    %v503 = vadd.f32 %v501, %v502
    %vm506 = vcmask 1041409
    %v507 = vsel %vm506, %v503, %v496
    %vm509 = vcmask 254976
    %510 = vst.msk [vmem:[#allocation7] sm:$0x3] %vm509, %v507
    // Predicated region
    $region18: #{attention_layer.1} parent=1 // pred_check
      _
    $region19: #{attention_layer.1} parent=1 // pred_check_branch
      %512 = sbr.rel (0) target = $region21
    $region20: #{attention_layer.1} parent=1 // pred_region
      %s514 = ssub.s32 32, 32
      %515 = vsyncadd [#allocation4], %s514
      %s517 = sshll.u32 [#allocation7], 4
      %s518 = int_to_ptr.vmem [resolvable:$true] %s517
      %520 = dma.vmem_to_hbm [thread:$0]  %s518, 32, %s2, [#allocation4]
    $region21: #{attention_layer.1} parent=1 // pred_fallthru
      _
    // Predicated region
    $region22: #{attention_layer.1} parent=1 // pred_check
      _
    $region23: #{attention_layer.1} parent=1 // pred_check_branch
      %522 = sbr.rel (0) target = $region25
    $region24: #{attention_layer.1} parent=1 // pred_region
      %523 = dma.done [#allocation4], 32
    $region25: #{attention_layer.1} parent=1 // pred_fallthru
      _
    %524 = vsyncpa [#allocation3], 1
    %525 = vsyncpa [#allocation6], 1
    %526 = vsyncpa [#allocation4], 1

</llo_original>
